<compile_context>
chip_gen: v7x
topology: tpu7x:2x2x1
jax: 0.10.0
libtpu: 0.0.40
codegen_flags: <defaults>
</compile_context>

<pallas_src>
import math
from functools import partial

import jax
import jax.numpy as jnp
from jax.experimental import pallas as pl
from jax.experimental.pallas import tpu as pltpu


_LN_EPS = 1e-5          # nn.LayerNorm default eps


def _round_up(x, m):
    return (x + m - 1) // m * m


def _choose_row_tile(rows, row_bytes, target_bytes=2 << 20):
    """Sublane-aligned row tile, ~target_bytes of x per tile.

    Prefers a tile that divides `rows` exactly (no ragged last block, no
    padding pass) and at least two grid steps when there is enough work
    (v7x megacore).  Ragged last blocks are still correct: Pallas masks the
    out-of-range stores and the computation is row-independent.
    """
    if rows < 16:
        return rows                               # single full block
    tile = (target_bytes // row_bytes) // 8 * 8
    tile = max(8, min(tile, _round_up(rows, 8)))
    if tile >= rows:                              # fits in one tile: split in 2
        tile = _round_up((rows + 1) // 2, 8)
    cand = tile
    while cand >= 8 and (tile - cand) <= 2048:    # bounded divisor search
        if rows % cand == 0:
            return cand
        cand -= 8
    return tile


# ---------------------------------------------------------------------------
# Kernels
# ---------------------------------------------------------------------------
def _packed_kernel(mm_dtype,
                   x_ref, w1_ref, b1_ref, w2_ref, b2_ref,
                   mavg_ref, gamma_ref, beta_ref, o_ref):
    """num_heads == 1, lane-packed layout.

    Each 128-lane row carries `pack` logical positions (contiguous C_in-lane
    groups).  Weights are block-diagonal, so the packed matmuls are exactly
    the per-position Linear layers; `mavg` is a block-diagonal averaging
    matrix that broadcasts each group's mean back to its lanes (LayerNorm
    statistics without cross-lane relayouts or masked stores).
    """
    x = x_ref[...]                                                  # (T, 128)
    xm = x.astype(mm_dtype)
    v = jnp.dot(xm, w1_ref[...],
                preferred_element_type=jnp.float32) + b1_ref[...]   # value proj
    out = jnp.dot(v.astype(mm_dtype), w2_ref[...],
                  preferred_element_type=jnp.float32) + b2_ref[...]  # out proj
    y = x.astype(jnp.float32) + out                                 # residual
    mu = jnp.dot(y, mavg_ref[...], preferred_element_type=jnp.float32)
    d = y - mu
    var = jnp.dot(d * d, mavg_ref[...], preferred_element_type=jnp.float32)
    o_ref[...] = (d * jax.lax.rsqrt(var + _LN_EPS) * gamma_ref[...]
                  + beta_ref[...]).astype(o_ref.dtype)


def _rows_kernel(num_heads, head_dim, c_out, mm_dtype,
                 x_ref, wp_ref, bp_ref, wo_ref, bo_ref,
                 gamma_ref, beta_ref, o_ref):
    """Generic fallback: one tile of flattened (B*S) rows, x_ref is (T, C_in)."""
    x = x_ref[...]
    xm = x.astype(mm_dtype)
    proj = jnp.dot(xm, wp_ref[...],
                   preferred_element_type=jnp.float32) + bp_ref[...]

    if num_heads == 1:
        # Softmax over a single head is identically 1 => attended == V.
        attended = proj
    else:
        H, dh, Co = num_heads, head_dim, c_out
        r = x.shape[0]
        q = proj[:, 0 * Co:1 * Co].reshape(r, H, dh)   # 1/sqrt(d) pre-folded
        k = proj[:, 1 * Co:2 * Co].reshape(r, H, dh)
        v = proj[:, 2 * Co:3 * Co].reshape(r, H, dh)
        s = jnp.einsum('rid,rjd->rij', q, k, preferred_element_type=jnp.float32)
        s = s - jnp.max(s, axis=-1, keepdims=True)
        e = jnp.exp(s)
        w = e / jnp.sum(e, axis=-1, keepdims=True)
        attended = jnp.einsum('rij,rjd->rid', w, v,
                              preferred_element_type=jnp.float32).reshape(r, H * dh)

    out = jnp.dot(attended.astype(mm_dtype), wo_ref[...],
                  preferred_element_type=jnp.float32) + bo_ref[...]
    y = x.astype(jnp.float32) + out
    mu = jnp.mean(y, axis=-1, keepdims=True)
    var = jnp.mean(jnp.square(y - mu), axis=-1, keepdims=True)
    o_ref[...] = ((y - mu) * jax.lax.rsqrt(var + _LN_EPS) * gamma_ref[...]
                  + beta_ref[...]).astype(o_ref.dtype)


# ---------------------------------------------------------------------------
# Host-side weight preparation (one time; transposes / fusion / packing)
# ---------------------------------------------------------------------------
def prepare_params(params, num_heads, *, mm_dtype=jnp.float32, pack_lanes=True):
    wq, bq = params["wq"], params["bq"]
    wk, bk = params["wk"], params["bk"]
    wv, bv = params["wv"], params["bv"]
    wo, bo = params["wo"], params["bo"]
    gamma, beta = params["gamma"], params["beta"]
    c_out, c_in = wq.shape                       # torch Linear weight: (out, in)
    head_dim = c_out // num_heads
    scale = 1.0 / math.sqrt(head_dim)

    prep = dict(c_in=c_in, c_out=c_out, head_dim=head_dim,
                num_heads=num_heads, mm_dtype=mm_dtype)

    # ---- generic row path weights ------------------------------------------
    if num_heads == 1:
        # Q/K are dead for a single head: project V only.
        w_proj = wv.T
        b_proj = bv.reshape(1, -1)
    else:
        # Fused QKV; fold the 1/sqrt(d) score scale into Q.
        w_proj = jnp.concatenate([wq.T * scale, wk.T, wv.T], axis=1)
        b_proj = jnp.concatenate([bq * scale, bk, bv]).reshape(1, -1)
    prep.update(
        w_proj=w_proj.astype(mm_dtype),
        b_proj=b_proj.astype(jnp.float32),
        wo=wo.T.astype(mm_dtype),
        bo=bo.reshape(1, -1).astype(jnp.float32),
        gamma=gamma.reshape(1, -1).astype(jnp.float32),
        beta=beta.reshape(1, -1).astype(jnp.float32),
    )

    # ---- lane-packed path (num_heads == 1 and C_in divides 128) ------------
    pack = 0
    if pack_lanes and num_heads == 1 and c_in < 128 and 128 % c_in == 0:
        pack = 128 // c_in

        def blockdiag(w, p):
            r, c = w.shape
            out = jnp.zeros((p * r, p * c), w.dtype)
            for g in range(p):
                out = out.at[g * r:(g + 1) * r, g * c:(g + 1) * c].set(w)
            return out

        prep.update(
            w1p=blockdiag(wv.T, pack).astype(mm_dtype),            # (128, P*Co)
            b1p=jnp.tile(bv, pack).reshape(1, -1).astype(jnp.float32),
            w2p=blockdiag(wo.T, pack).astype(mm_dtype),             # (P*Co, 128)
            b2p=jnp.tile(bo, pack).reshape(1, -1).astype(jnp.float32),
            mavg=blockdiag(jnp.full((c_in, c_in), 1.0 / c_in, jnp.float32), pack),
            gamma_p=jnp.tile(gamma, pack).reshape(1, -1).astype(jnp.float32),
            beta_p=jnp.tile(beta, pack).reshape(1, -1).astype(jnp.float32),
        )
    prep["pack"] = pack
    return prep


# ---------------------------------------------------------------------------
# Wrapper
# ---------------------------------------------------------------------------
def self_attention_block(x, prep, *, row_tile=None,
                         vmem_limit_bytes=32 * 1024 * 1024):
    B, S, C_in = x.shape
    R = B * S
    pack = prep.get("pack", 0)
    use_packed = pack > 1 and R % pack == 0

    if use_packed:
        rows, lanes = R // pack, pack * C_in          # lanes == 128
        weights = (prep["w1p"], prep["b1p"], prep["w2p"], prep["b2p"],
                   prep["mavg"], prep["gamma_p"], prep["beta_p"])
        kernel = partial(_packed_kernel, prep["mm_dtype"])
    else:
        rows, lanes = R, C_in
        weights = (prep["w_proj"], prep["b_proj"], prep["wo"], prep["bo"],
                   prep["gamma"], prep["beta"])
        kernel = partial(_rows_kernel, prep["num_heads"], prep["head_dim"],
                         prep["c_out"], prep["mm_dtype"])

    xr = x.reshape(rows, lanes)                       # free: same HBM layout
    tile = row_tile or _choose_row_tile(rows, lanes * x.dtype.itemsize)

    def const_spec(a):                                # weights: resident, index 0
        return pl.BlockSpec(a.shape, lambda r: (0,) * a.ndim)

    out = pl.pallas_call(
        kernel,
        out_shape=jax.ShapeDtypeStruct((rows, lanes), x.dtype),
        grid=(pl.cdiv(rows, tile),),
        in_specs=[pl.BlockSpec((tile, lanes), lambda r: (r, 0))]
                 + [const_spec(a) for a in weights],
        out_specs=pl.BlockSpec((tile, lanes), lambda r: (r, 0)),
        compiler_params=pltpu.CompilerParams(
            dimension_semantics=("parallel",),        # row tiles shard on v7x
            vmem_limit_bytes=vmem_limit_bytes),
    )(xr, *weights)

    return out.reshape(B, S, C_in)


# ---------------------------------------------------------------------------
# Params / reference
# ---------------------------------------------------------------------------
def init_params(key, in_ch, out_ch, num_heads):
    """Deterministic PyTorch-default-style init (uniform +-1/sqrt(fan_in))."""
    ks = jax.random.split(key, 8)

    def linear(kw, kb, fan_in, fan_out):
        bound = 1.0 / math.sqrt(fan_in)
        w = jax.random.uniform(kw, (fan_out, fan_in), jnp.float32, -bound, bound)
        b = jax.random.uniform(kb, (fan_out,), jnp.float32, -bound, bound)
        return w, b

    wq, bq = linear(ks[0], ks[1], in_ch, out_ch)
    wk, bk = linear(ks[2], ks[3], in_ch, out_ch)
    wv, bv = linear(ks[4], ks[5], in_ch, out_ch)
    wo, bo = linear(ks[6], ks[7], out_ch * num_heads, in_ch)
    gamma = jnp.ones((in_ch,), jnp.float32)
    beta = jnp.zeros((in_ch,), jnp.float32)
    return dict(wq=wq, bq=bq, wk=wk, bk=bk, wv=wv, bv=bv,
                wo=wo, bo=bo, gamma=gamma, beta=beta)


def reference(x, p, num_heads):
    """Pure-JAX transcription of the PyTorch forward() (fp32 matmuls)."""
    PREC = jax.lax.Precision.HIGHEST
    B, S, _ = x.shape
    q = jnp.dot(x, p["wq"].T, precision=PREC) + p["bq"]
    k = jnp.dot(x, p["wk"].T, precision=PREC) + p["bk"]
    v = jnp.dot(x, p["wv"].T, precision=PREC) + p["bv"]
    d = q.shape[-1] // num_heads
    q4 = q.reshape(B, S, num_heads, d)
    k4 = k.reshape(B, S, num_heads, d)
    v4 = v.reshape(B, S, num_heads, d)
    scores = jnp.einsum("bshd,bstd->bsht", q4, k4, precision=PREC) / math.sqrt(d)
    w = jax.nn.softmax(scores, axis=-1)
    att = jnp.einsum("bsht,bstd->bshd", w, v4, precision=PREC).reshape(B, S, -1)
    out = jnp.dot(att, p["wo"].T, precision=PREC) + p["bo"]
    y = x + out
    mu = y.mean(-1, keepdims=True)
    var = ((y - mu) ** 2).mean(-1, keepdims=True)
    return (y - mu) / jnp.sqrt(var + _LN_EPS) * p["gamma"] + p["beta"]


if __name__ == "__main__":
    B, S = 2, 8
    in_channels, out_channels, num_heads = 32, 32, 1   # see TODO(synk) above
    key = jax.random.PRNGKey(0)
    k_x, k_p = jax.random.split(key)
    x = jax.random.normal(k_x, (B, S, in_channels), dtype=jnp.float32)
    params = init_params(k_p, in_channels, out_channels, num_heads)

    y_ref = reference(x, params, num_heads)

    # Lane-packed (fast) path.
    prep_packed = prepare_params(params, num_heads)
    y_packed = jax.block_until_ready(self_attention_block(x, prep_packed))

    # Generic row path (fallback coverage).
    prep_rows = prepare_params(params, num_heads, pack_lanes=False)
    y_rows = jax.block_until_ready(self_attention_block(x, prep_rows))

    assert y_packed.shape == (B, S, in_channels)
    assert jnp.allclose(y_packed, y_ref, atol=1e-3, rtol=1e-3), \
        "packed kernel / reference mismatch"
    assert jnp.allclose(y_rows, y_ref, atol=1e-3, rtol=1e-3), \
        "row kernel / reference mismatch"
    print("KERNEL_OK")
</pallas_src>

<mosaic_0001>
module attributes {stable_mosaic.version = 11 : i64} {
  func.func @_packed_kernel(%arg0: i32, %arg1: memref<4x128xf32, #tpu.memory_space<vmem>>, %arg2: memref<128x128xf32, #tpu.memory_space<vmem>>, %arg3: memref<1x128xf32, #tpu.memory_space<vmem>>, %arg4: memref<128x128xf32, #tpu.memory_space<vmem>>, %arg5: memref<1x128xf32, #tpu.memory_space<vmem>>, %arg6: memref<128x128xf32, #tpu.memory_space<vmem>>, %arg7: memref<1x128xf32, #tpu.memory_space<vmem>>, %arg8: memref<1x128xf32, #tpu.memory_space<vmem>>, %arg9: memref<4x128xf32, #tpu.memory_space<vmem>>) attributes {dimension_semantics = [#tpu.dimension_semantics<parallel>], iteration_bounds = array<i64: 1>, scalar_prefetch = 0 : i64, scratch_operands = 0 : i64, tpu.core_type = #tpu.core_type<tc>, window_params = [{transform_indices = @transform_0, window_bounds = array<i64: 4, 128>}, {pipeline_mode = #tpu.pipeline_mode<synchronous>, transform_indices = @transform_1, window_bounds = array<i64: 128, 128>}, {pipeline_mode = #tpu.pipeline_mode<synchronous>, transform_indices = @transform_2, window_bounds = array<i64: 1, 128>}, {pipeline_mode = #tpu.pipeline_mode<synchronous>, transform_indices = @transform_3, window_bounds = array<i64: 128, 128>}, {pipeline_mode = #tpu.pipeline_mode<synchronous>, transform_indices = @transform_4, window_bounds = array<i64: 1, 128>}, {pipeline_mode = #tpu.pipeline_mode<synchronous>, transform_indices = @transform_5, window_bounds = array<i64: 128, 128>}, {pipeline_mode = #tpu.pipeline_mode<synchronous>, transform_indices = @transform_6, window_bounds = array<i64: 1, 128>}, {pipeline_mode = #tpu.pipeline_mode<synchronous>, transform_indices = @transform_7, window_bounds = array<i64: 1, 128>}, {transform_indices = @transform_8, window_bounds = array<i64: 4, 128>}]} {
    %c0 = arith.constant 0 : index
    %c0_0 = arith.constant 0 : index
    %0 = vector.load %arg1[%c0, %c0_0] : memref<4x128xf32, #tpu.memory_space<vmem>>, vector<4x128xf32>
    %c0_1 = arith.constant 0 : index
    %c0_2 = arith.constant 0 : index
    %1 = vector.load %arg2[%c0_1, %c0_2] : memref<128x128xf32, #tpu.memory_space<vmem>>, vector<128x128xf32>
    %cst = arith.constant dense<0.000000e+00> : vector<4x128xf32>
    %2 = tpu.matmul %0, %1, %cst {dimension_numbers = #tpu.dot_dimension_numbers<[1], [0], [0], [1], [0, 0, 1, 1], [], []>} : vector<4x128xf32>, vector<128x128xf32>, vector<4x128xf32> -> vector<4x128xf32>
    %c0_3 = arith.constant 0 : index
    %c0_4 = arith.constant 0 : index
    %3 = vector.load %arg3[%c0_3, %c0_4] : memref<1x128xf32, #tpu.memory_space<vmem>>, vector<1x128xf32>
    %4 = vector.broadcast %3 : vector<1x128xf32> to vector<4x128xf32>
    %5 = arith.addf %2, %4 : vector<4x128xf32>
    %c0_5 = arith.constant 0 : index
    %c0_6 = arith.constant 0 : index
    %6 = vector.load %arg4[%c0_5, %c0_6] : memref<128x128xf32, #tpu.memory_space<vmem>>, vector<128x128xf32>
    %cst_7 = arith.constant dense<0.000000e+00> : vector<4x128xf32>
    %7 = tpu.matmul %5, %6, %cst_7 {dimension_numbers = #tpu.dot_dimension_numbers<[1], [0], [0], [1], [0, 0, 1, 1], [], []>} : vector<4x128xf32>, vector<128x128xf32>, vector<4x128xf32> -> vector<4x128xf32>
    %c0_8 = arith.constant 0 : index
    %c0_9 = arith.constant 0 : index
    %8 = vector.load %arg5[%c0_8, %c0_9] : memref<1x128xf32, #tpu.memory_space<vmem>>, vector<1x128xf32>
    %9 = vector.broadcast %8 : vector<1x128xf32> to vector<4x128xf32>
    %10 = arith.addf %7, %9 : vector<4x128xf32>
    %11 = arith.addf %0, %10 : vector<4x128xf32>
    %c0_10 = arith.constant 0 : index
    %c0_11 = arith.constant 0 : index
    %12 = vector.load %arg6[%c0_10, %c0_11] : memref<128x128xf32, #tpu.memory_space<vmem>>, vector<128x128xf32>
    %cst_12 = arith.constant dense<0.000000e+00> : vector<4x128xf32>
    %13 = tpu.matmul %11, %12, %cst_12 {dimension_numbers = #tpu.dot_dimension_numbers<[1], [0], [0], [1], [0, 0, 1, 1], [], []>} : vector<4x128xf32>, vector<128x128xf32>, vector<4x128xf32> -> vector<4x128xf32>
    %14 = arith.subf %11, %13 : vector<4x128xf32>
    %15 = arith.mulf %14, %14 : vector<4x128xf32>
    %c0_13 = arith.constant 0 : index
    %c0_14 = arith.constant 0 : index
    %16 = vector.load %arg6[%c0_13, %c0_14] : memref<128x128xf32, #tpu.memory_space<vmem>>, vector<128x128xf32>
    %cst_15 = arith.constant dense<0.000000e+00> : vector<4x128xf32>
    %17 = tpu.matmul %15, %16, %cst_15 {dimension_numbers = #tpu.dot_dimension_numbers<[1], [0], [0], [1], [0, 0, 1, 1], [], []>} : vector<4x128xf32>, vector<128x128xf32>, vector<4x128xf32> -> vector<4x128xf32>
    %cst_16 = arith.constant 9.99999974E-6 : f32
    %18 = vector.broadcast %cst_16 : f32 to vector<4x128xf32>
    %19 = arith.addf %17, %18 : vector<4x128xf32>
    %20 = math.rsqrt %19 : vector<4x128xf32>
    %21 = arith.mulf %14, %20 : vector<4x128xf32>
    %c0_17 = arith.constant 0 : index
    %c0_18 = arith.constant 0 : index
    %22 = vector.load %arg7[%c0_17, %c0_18] : memref<1x128xf32, #tpu.memory_space<vmem>>, vector<1x128xf32>
    %23 = vector.broadcast %22 : vector<1x128xf32> to vector<4x128xf32>
    %24 = arith.mulf %21, %23 : vector<4x128xf32>
    %c0_19 = arith.constant 0 : index
    %c0_20 = arith.constant 0 : index
    %25 = vector.load %arg8[%c0_19, %c0_20] : memref<1x128xf32, #tpu.memory_space<vmem>>, vector<1x128xf32>
    %26 = vector.broadcast %25 : vector<1x128xf32> to vector<4x128xf32>
    %27 = arith.addf %24, %26 : vector<4x128xf32>
    %c0_21 = arith.constant 0 : index
    %c0_22 = arith.constant 0 : index
    %28 = vector.load %arg9[%c0_21, %c0_22] : memref<4x128xf32, #tpu.memory_space<vmem>>, vector<4x128xf32>
    tpu.vector_store %arg9[%c0_21, %c0_22], %27 {strides = array<i32>} : memref<4x128xf32, #tpu.memory_space<vmem>>, vector<4x128xf32>,
    return
  }
  func.func @transform_0(%arg0: i32) -> (i32, i32) {
    %c0_i32 = arith.constant 0 : i32
    %c0_i32_0 = arith.constant 0 : i32
    return %arg0, %c0_i32 : i32, i32
  }
  func.func @transform_1(%arg0: i32) -> (i32, i32) {
    %c0_i32 = arith.constant 0 : i32
    %c0_i32_0 = arith.constant 0 : i32
    %c0_i32_1 = arith.constant 0 : i32
    return %c0_i32, %c0_i32_0 : i32, i32
  }
  func.func @transform_2(%arg0: i32) -> (i32, i32) {
    %c0_i32 = arith.constant 0 : i32
    %c0_i32_0 = arith.constant 0 : i32
    %c0_i32_1 = arith.constant 0 : i32
    return %c0_i32, %c0_i32_0 : i32, i32
  }
  func.func @transform_3(%arg0: i32) -> (i32, i32) {
    %c0_i32 = arith.constant 0 : i32
    %c0_i32_0 = arith.constant 0 : i32
    %c0_i32_1 = arith.constant 0 : i32
    return %c0_i32, %c0_i32_0 : i32, i32
  }
  func.func @transform_4(%arg0: i32) -> (i32, i32) {
    %c0_i32 = arith.constant 0 : i32
    %c0_i32_0 = arith.constant 0 : i32
    %c0_i32_1 = arith.constant 0 : i32
    return %c0_i32, %c0_i32_0 : i32, i32
  }
  func.func @transform_5(%arg0: i32) -> (i32, i32) {
    %c0_i32 = arith.constant 0 : i32
    %c0_i32_0 = arith.constant 0 : i32
    %c0_i32_1 = arith.constant 0 : i32
    return %c0_i32, %c0_i32_0 : i32, i32
  }
  func.func @transform_6(%arg0: i32) -> (i32, i32) {
    %c0_i32 = arith.constant 0 : i32
    %c0_i32_0 = arith.constant 0 : i32
    %c0_i32_1 = arith.constant 0 : i32
    return %c0_i32, %c0_i32_0 : i32, i32
  }
  func.func @transform_7(%arg0: i32) -> (i32, i32) {
    %c0_i32 = arith.constant 0 : i32
    %c0_i32_0 = arith.constant 0 : i32
    %c0_i32_1 = arith.constant 0 : i32
    return %c0_i32, %c0_i32_0 : i32, i32
  }
  func.func @transform_8(%arg0: i32) -> (i32, i32) {
    %c0_i32 = arith.constant 0 : i32
    %c0_i32_0 = arith.constant 0 : i32
    return %arg0, %c0_i32 : i32, i32
  }
}

</mosaic_0001>

<llo_original>
// kernel: tpu_custom_call.1
$region0: #{tpu_custom_call.1}
  #allocation0 [shape = 'u32[]', space=smem, size = 0x4, offset = 0x4, fixed_abs, tag = 'smem constant byte address 0x4 - core index']
  #allocation1 [shape = 'u32[144,128]{1,0:T(1,128)}', space=vmem, size = 0x12000, scoped, tag = 'internal scratch']
  %s0 = inlined_call_operand.hbm [shape: f32[4,128], index: 0, kind: input, shape index: {}]
  %s1 = inlined_call_operand.hbm [shape: f32[128,128], index: 1, kind: input, shape index: {}]
  %s2 = inlined_call_operand.vmem [shape: f32[1,128], index: 2, kind: input, shape index: {}]
  %s3 = inlined_call_operand.hbm [shape: f32[128,128], index: 3, kind: input, shape index: {}]
  %s4 = inlined_call_operand.vmem [shape: f32[1,128], index: 4, kind: input, shape index: {}]
  %s5 = inlined_call_operand.hbm [shape: f32[128,128], index: 5, kind: input, shape index: {}]
  %s6 = inlined_call_operand.vmem [shape: f32[1,128], index: 6, kind: input, shape index: {}]
  %s7 = inlined_call_operand.vmem [shape: f32[1,128], index: 7, kind: input, shape index: {}]
  %s8 = inlined_call_operand.hbm [shape: f32[4,128], index: 8, kind: output, shape index: {}]
  %s9 = sld [smem:[#allocation0]]
  $region58: #{tpu_custom_call.1} parent=0
    _
  %s11 = ssub.s32 1, %s9
  %s12 = scalar_select 0, %s11, %s9
  $region1: #{tpu_custom_call.1} parent=0
    #allocation2 [shape = 'u8[2048]{0}', space=vmem, size = 0x800, scoped, tag = 'input window, operand 0, single buffered']
    #allocation3 [shape = 's32[1]{0}', space=sflag, size = 0x4, scoped, tag = 'scoped memory for tpu_custom_call.1']
    #allocation4 [shape = 's32[1]{0}', space=sflag, size = 0x4, scoped, tag = 'scoped memory for tpu_custom_call.1']
    #allocation5 [shape = 'u8[65536]{0}', space=vmem, size = 0x10000, scoped, tag = 'input window, operand 1, single buffered']
    #allocation6 [shape = 's32[1]{0}', space=sflag, size = 0x4, scoped, tag = 'scoped memory for tpu_custom_call.1']
    #allocation7 [shape = 'u8[65536]{0}', space=vmem, size = 0x10000, scoped, tag = 'input window, operand 3, single buffered']
    #allocation8 [shape = 'u8[65536]{0}', space=vmem, size = 0x10000, scoped, tag = 'input window, operand 5, single buffered']
    #allocation9 [shape = 's32[1]{0}', space=sflag, size = 0x4, scoped, tag = 'scoped memory for tpu_custom_call.1']
    #allocation10 [shape = 'u8[2048]{0}', space=vmem, size = 0x800, scoped, tag = 'output window, operand 0, single buffered']
    %13 = vsyncpa [#allocation3], 0
    %14 = vsyncpa [#allocation6], 0
    %15 = vsyncpa [#allocation9], 0
    %16 = vsyncpa [#allocation4], 0
    // Predicated region
    $region2: #{tpu_custom_call.1} parent=1 // pred_check
      _
    $region3: #{tpu_custom_call.1} parent=1 // pred_check_branch
      %18 = sbr.rel (0) target = $region5
    $region4: #{tpu_custom_call.1} parent=1 // pred_region
      %s20 = ssub.s32 64, 64
      %21 = vsyncadd [#allocation3], %s20
      %s23 = sshll.u32 [#allocation2], 4
      %s24 = int_to_ptr.vmem [resolvable:$true] %s23
      %26 = dma.hbm_to_vmem [thread:$0]  %s0, 64, %s24, [#allocation3]
    $region5: #{tpu_custom_call.1} parent=1 // pred_fallthru
      _
    // Predicated region
    $region6: #{tpu_custom_call.1} parent=1 // pred_check
      _
    $region7: #{tpu_custom_call.1} parent=1 // pred_check_branch
      %28 = sbr.rel (0) target = $region9
    $region8: #{tpu_custom_call.1} parent=1 // pred_region
      %s30 = ssub.s32 2048, 2048
      %31 = vsyncadd [#allocation6], %s30
      %s32 = sshll.u32 [#allocation5], 4
      %s33 = int_to_ptr.vmem [resolvable:$true] %s32
      %38 = dma.hbm_to_vmem [thread:$0]  %s1, 2048, %s33, [#allocation6], 128, 128, 8
    $region9: #{tpu_custom_call.1} parent=1 // pred_fallthru
      _
    // Predicated region
    $region10: #{tpu_custom_call.1} parent=1 // pred_check
      _
    $region11: #{tpu_custom_call.1} parent=1 // pred_check_branch
      %40 = sbr.rel (0) target = $region13
    $region12: #{tpu_custom_call.1} parent=1 // pred_region
      _
    $region13: #{tpu_custom_call.1} parent=1 // pred_fallthru
      _
    // Predicated region
    $region14: #{tpu_custom_call.1} parent=1 // pred_check
      _
    $region15: #{tpu_custom_call.1} parent=1 // pred_check_branch
      %42 = sbr.rel (0) target = $region17
    $region16: #{tpu_custom_call.1} parent=1 // pred_region
      %s44 = ssub.s32 2048, 2048
      %45 = vsyncadd [#allocation6], %s44
      %s46 = sshll.u32 [#allocation7], 4
      %s47 = int_to_ptr.vmem [resolvable:$true] %s46
      %52 = dma.hbm_to_vmem [thread:$0]  %s3, 2048, %s47, [#allocation6], 128, 128, 8
    $region17: #{tpu_custom_call.1} parent=1 // pred_fallthru
      _
    // Predicated region
    $region18: #{tpu_custom_call.1} parent=1 // pred_check
      _
    $region19: #{tpu_custom_call.1} parent=1 // pred_check_branch
      %54 = sbr.rel (0) target = $region21
    $region20: #{tpu_custom_call.1} parent=1 // pred_region
      _
    $region21: #{tpu_custom_call.1} parent=1 // pred_fallthru
      _
    // Predicated region
    $region22: #{tpu_custom_call.1} parent=1 // pred_check
      _
    $region23: #{tpu_custom_call.1} parent=1 // pred_check_branch
      %56 = sbr.rel (0) target = $region25
    $region24: #{tpu_custom_call.1} parent=1 // pred_region
      %s58 = ssub.s32 2048, 2048
      %59 = vsyncadd [#allocation9], %s58
      %s60 = sshll.u32 [#allocation8], 4
      %s61 = int_to_ptr.vmem [resolvable:$true] %s60
      %66 = dma.hbm_to_vmem [thread:$0]  %s5, 2048, %s61, [#allocation9], 128, 128, 8
    $region25: #{tpu_custom_call.1} parent=1 // pred_fallthru
      _
    // Predicated region
    $region26: #{tpu_custom_call.1} parent=1 // pred_check
      _
    $region27: #{tpu_custom_call.1} parent=1 // pred_check_branch
      %68 = sbr.rel (0) target = $region29
    $region28: #{tpu_custom_call.1} parent=1 // pred_region
      _
    $region29: #{tpu_custom_call.1} parent=1 // pred_fallthru
      _
    // Predicated region
    $region30: #{tpu_custom_call.1} parent=1 // pred_check
      _
    $region31: #{tpu_custom_call.1} parent=1 // pred_check_branch
      %70 = sbr.rel (0) target = $region33
    $region32: #{tpu_custom_call.1} parent=1 // pred_region
      _
    $region33: #{tpu_custom_call.1} parent=1 // pred_fallthru
      _
    // Predicated region
    $region34: #{tpu_custom_call.1} parent=1 // pred_check
      _
    $region35: #{tpu_custom_call.1} parent=1 // pred_check_branch
      %72 = sbr.rel (0) target = $region37
    $region36: #{tpu_custom_call.1} parent=1 // pred_region
      %73 = dma.done [#allocation3], 64
    $region37: #{tpu_custom_call.1} parent=1 // pred_fallthru
      _
    // Predicated region
    $region38: #{tpu_custom_call.1} parent=1 // pred_check
      _
    $region39: #{tpu_custom_call.1} parent=1 // pred_check_branch
      %75 = sbr.rel (0) target = $region41
    $region40: #{tpu_custom_call.1} parent=1 // pred_region
      %76 = dma.done [#allocation6], 2048
    $region41: #{tpu_custom_call.1} parent=1 // pred_fallthru
      _
    // Predicated region
    $region42: #{tpu_custom_call.1} parent=1 // pred_check
      _
    $region43: #{tpu_custom_call.1} parent=1 // pred_check_branch
      %78 = sbr.rel (0) target = $region45
    $region44: #{tpu_custom_call.1} parent=1 // pred_region
      %79 = dma.done [#allocation6], 2048
    $region45: #{tpu_custom_call.1} parent=1 // pred_fallthru
      _
    // Predicated region
    $region46: #{tpu_custom_call.1} parent=1 // pred_check
      _
    $region47: #{tpu_custom_call.1} parent=1 // pred_check_branch
      %81 = sbr.rel (0) target = $region49
    $region48: #{tpu_custom_call.1} parent=1 // pred_region
      %82 = dma.done [#allocation9], 2048
    $region49: #{tpu_custom_call.1} parent=1 // pred_fallthru
      _
    %v83 = vld [vmem:[#allocation2] sm:$0xf]
    %v84 = vld [vmem:[#allocation5] sm:$0xff]
    %v85 = vld [vmem:[#allocation5 + $0x8] sm:$0xff]
    %v86 = vld [vmem:[#allocation5 + $0x10] sm:$0xff]
    %v87 = vld [vmem:[#allocation5 + $0x18] sm:$0xff]
    %v88 = vld [vmem:[#allocation5 + $0x20] sm:$0xff]
    %v89 = vld [vmem:[#allocation5 + $0x28] sm:$0xff]
    %v90 = vld [vmem:[#allocation5 + $0x30] sm:$0xff]
    %v91 = vld [vmem:[#allocation5 + $0x38] sm:$0xff]
    %v92 = vld [vmem:[#allocation5 + $0x40] sm:$0xff]
    %v93 = vld [vmem:[#allocation5 + $0x48] sm:$0xff]
    %v94 = vld [vmem:[#allocation5 + $0x50] sm:$0xff]
    %v95 = vld [vmem:[#allocation5 + $0x58] sm:$0xff]
    %v96 = vld [vmem:[#allocation5 + $0x60] sm:$0xff]
    %v97 = vld [vmem:[#allocation5 + $0x68] sm:$0xff]
    %v98 = vld [vmem:[#allocation5 + $0x70] sm:$0xff]
    %v99 = vld [vmem:[#allocation5 + $0x78] sm:$0xff]
    %v100 = vld [vmem:[%s2] sm:$0x1]
    %v102 = vlaneseq
    %v103 = vshrl.u32 %v102, 7
    %v104 = vsub.s32 0, %v103
    %v105 = vrot.slane %v100, %v104
    %107 = vmatprep.subr.mxu0 0.0
    %108 = vmatpush1.msra.mxu0 %v84
    %109 = vmatprep.subr.mxu0 0.0
    %110 = vmatpush1.msra.mxu0 %v85
    %111 = vmatprep.subr.mxu0 0.0
    %112 = vmatpush1.msra.mxu0 %v86
    %113 = vmatprep.subr.mxu0 0.0
    %114 = vmatpush1.msra.mxu0 %v87
    %115 = vmatprep.subr.mxu0 0.0
    %116 = vmatpush1.msra.mxu0 %v88
    %117 = vmatprep.subr.mxu0 0.0
    %118 = vmatpush1.msra.mxu0 %v89
    %119 = vmatprep.subr.mxu0 0.0
    %120 = vmatpush1.msra.mxu0 %v90
    %121 = vmatprep.subr.mxu0 0.0
    %122 = vmatpush1.msra.mxu0 %v91
    %123 = vmatprep.subr.mxu0 0.0
    %124 = vmatpush1.msra.mxu0 %v92
    %125 = vmatprep.subr.mxu0 0.0
    %126 = vmatpush1.msra.mxu0 %v93
    %127 = vmatprep.subr.mxu0 0.0
    %128 = vmatpush1.msra.mxu0 %v94
    %129 = vmatprep.subr.mxu0 0.0
    %130 = vmatpush1.msra.mxu0 %v95
    %131 = vmatprep.subr.mxu0 0.0
    %132 = vmatpush1.msra.mxu0 %v96
    %133 = vmatprep.subr.mxu0 0.0
    %134 = vmatpush1.msra.mxu0 %v97
    %135 = vmatprep.subr.mxu0 0.0
    %136 = vmatpush1.msra.mxu0 %v98
    %137 = vmatprep.subr.mxu0 0.0
    %138 = vmatpush1.msra.mxu0 %v99
    %139 = vmatprep.subr.mxu0 0.0
    %140 = vmatpush1.msra.mxu0 0.0
    %141 = vmatprep.subr.mxu0 0.0
    %142 = vmatpush1.msra.mxu0 0.0
    %143 = vmatprep.subr.mxu0 0.0
    %144 = vmatpush1.msra.mxu0 0.0
    %145 = vmatprep.subr.mxu0 0.0
    %146 = vmatpush1.msra.mxu0 0.0
    %147 = vmatprep.subr.mxu0 0.0
    %148 = vmatpush1.msra.mxu0 0.0
    %149 = vmatprep.subr.mxu0 0.0
    %150 = vmatpush1.msra.mxu0 0.0
    %151 = vmatprep.subr.mxu0 0.0
    %152 = vmatpush1.msra.mxu0 0.0
    %153 = vmatprep.subr.mxu0 0.0
    %154 = vmatpush1.msra.mxu0 0.0
    %155 = vmatprep.subr.mxu0 0.0
    %156 = vmatpush1.msra.mxu0 0.0
    %157 = vmatprep.subr.mxu0 0.0
    %158 = vmatpush1.msra.mxu0 0.0
    %159 = vmatprep.subr.mxu0 0.0
    %160 = vmatpush1.msra.mxu0 0.0
    %161 = vmatprep.subr.mxu0 0.0
    %162 = vmatpush1.msra.mxu0 0.0
    %163 = vmatprep.subr.mxu0 0.0
    %164 = vmatpush1.msra.mxu0 0.0
    %165 = vmatprep.subr.mxu0 0.0
    %166 = vmatpush1.msra.mxu0 0.0
    %167 = vmatprep.subr.mxu0 0.0
    %168 = vmatpush1.msra.mxu0 0.0
    %169 = vmatprep.subr.mxu0 0.0
    %170 = vmatpush1.msra.mxu0 0.0
    %171 = vmatprep.mubr.f32.mxu0 0.0
    %172 = vmatmul.mubr.f32.gmra.mrb[0].mxu0 %v83
    %v173 = vpop.f32.mrb[0].mxu0
    %v174 = vadd.f32 %v105, %v173
    %v175 = vpop.f32.mrb[0].mxu0
    %176 = vdwg.mxu0
    %v177 = vld [vmem:[#allocation7] sm:$0xff]
    %v178 = vld [vmem:[#allocation7 + $0x8] sm:$0xff]
    %v179 = vld [vmem:[#allocation7 + $0x10] sm:$0xff]
    %v180 = vld [vmem:[#allocation7 + $0x18] sm:$0xff]
    %v181 = vld [vmem:[#allocation7 + $0x20] sm:$0xff]
    %v182 = vld [vmem:[#allocation7 + $0x28] sm:$0xff]
    %v183 = vld [vmem:[#allocation7 + $0x30] sm:$0xff]
    %v184 = vld [vmem:[#allocation7 + $0x38] sm:$0xff]
    %v185 = vld [vmem:[#allocation7 + $0x40] sm:$0xff]
    %v186 = vld [vmem:[#allocation7 + $0x48] sm:$0xff]
    %v187 = vld [vmem:[#allocation7 + $0x50] sm:$0xff]
    %v188 = vld [vmem:[#allocation7 + $0x58] sm:$0xff]
    %v189 = vld [vmem:[#allocation7 + $0x60] sm:$0xff]
    %v190 = vld [vmem:[#allocation7 + $0x68] sm:$0xff]
    %v191 = vld [vmem:[#allocation7 + $0x70] sm:$0xff]
    %v192 = vld [vmem:[#allocation7 + $0x78] sm:$0xff]
    %v193 = vld [vmem:[%s4] sm:$0x1]
    %v195 = vlaneseq
    %v196 = vshrl.u32 %v195, 7
    %v197 = vsub.s32 0, %v196
    %v198 = vrot.slane %v193, %v197
    %200 = vmatprep.subr.mxu0 0.0
    %201 = vmatpush1.msra.mxu0 %v177
    %202 = vmatprep.subr.mxu0 0.0
    %203 = vmatpush1.msra.mxu0 %v178
    %204 = vmatprep.subr.mxu0 0.0
    %205 = vmatpush1.msra.mxu0 %v179
    %206 = vmatprep.subr.mxu0 0.0
    %207 = vmatpush1.msra.mxu0 %v180
    %208 = vmatprep.subr.mxu0 0.0
    %209 = vmatpush1.msra.mxu0 %v181
    %210 = vmatprep.subr.mxu0 0.0
    %211 = vmatpush1.msra.mxu0 %v182
    %212 = vmatprep.subr.mxu0 0.0
    %213 = vmatpush1.msra.mxu0 %v183
    %214 = vmatprep.subr.mxu0 0.0
    %215 = vmatpush1.msra.mxu0 %v184
    %216 = vmatprep.subr.mxu0 0.0
    %217 = vmatpush1.msra.mxu0 %v185
    %218 = vmatprep.subr.mxu0 0.0
    %219 = vmatpush1.msra.mxu0 %v186
    %220 = vmatprep.subr.mxu0 0.0
    %221 = vmatpush1.msra.mxu0 %v187
    %222 = vmatprep.subr.mxu0 0.0
    %223 = vmatpush1.msra.mxu0 %v188
    %224 = vmatprep.subr.mxu0 0.0
    %225 = vmatpush1.msra.mxu0 %v189
    %226 = vmatprep.subr.mxu0 0.0
    %227 = vmatpush1.msra.mxu0 %v190
    %228 = vmatprep.subr.mxu0 0.0
    %229 = vmatpush1.msra.mxu0 %v191
    %230 = vmatprep.subr.mxu0 0.0
    %231 = vmatpush1.msra.mxu0 %v192
    %232 = vmatprep.subr.mxu0 0.0
    %233 = vmatpush1.msra.mxu0 0.0
    %234 = vmatprep.subr.mxu0 0.0
    %235 = vmatpush1.msra.mxu0 0.0
    %236 = vmatprep.subr.mxu0 0.0
    %237 = vmatpush1.msra.mxu0 0.0
    %238 = vmatprep.subr.mxu0 0.0
    %239 = vmatpush1.msra.mxu0 0.0
    %240 = vmatprep.subr.mxu0 0.0
    %241 = vmatpush1.msra.mxu0 0.0
    %242 = vmatprep.subr.mxu0 0.0
    %243 = vmatpush1.msra.mxu0 0.0
    %244 = vmatprep.subr.mxu0 0.0
    %245 = vmatpush1.msra.mxu0 0.0
    %246 = vmatprep.subr.mxu0 0.0
    %247 = vmatpush1.msra.mxu0 0.0
    %248 = vmatprep.subr.mxu0 0.0
    %249 = vmatpush1.msra.mxu0 0.0
    %250 = vmatprep.subr.mxu0 0.0
    %251 = vmatpush1.msra.mxu0 0.0
    %252 = vmatprep.subr.mxu0 0.0
    %253 = vmatpush1.msra.mxu0 0.0
    %254 = vmatprep.subr.mxu0 0.0
    %255 = vmatpush1.msra.mxu0 0.0
    %256 = vmatprep.subr.mxu0 0.0
    %257 = vmatpush1.msra.mxu0 0.0
    %258 = vmatprep.subr.mxu0 0.0
    %259 = vmatpush1.msra.mxu0 0.0
    %260 = vmatprep.subr.mxu0 0.0
    %261 = vmatpush1.msra.mxu0 0.0
    %262 = vmatprep.subr.mxu0 0.0
    %263 = vmatpush1.msra.mxu0 0.0
    %264 = vmatprep.mubr.f32.mxu0 0.0
    %265 = vmatmul.mubr.f32.gmra.mrb[0].mxu0 %v174
    %v266 = vpop.f32.mrb[0].mxu0
    %v267 = vadd.f32 %v198, %v266
    %v268 = vpop.f32.mrb[0].mxu0
    %269 = vdwg.mxu0
    %v270 = vadd.f32 %v83, %v267
    %v271 = vld [vmem:[#allocation8] sm:$0xff]
    %v272 = vld [vmem:[#allocation8 + $0x8] sm:$0xff]
    %v273 = vld [vmem:[#allocation8 + $0x10] sm:$0xff]
    %v274 = vld [vmem:[#allocation8 + $0x18] sm:$0xff]
    %v275 = vld [vmem:[#allocation8 + $0x20] sm:$0xff]
    %v276 = vld [vmem:[#allocation8 + $0x28] sm:$0xff]
    %v277 = vld [vmem:[#allocation8 + $0x30] sm:$0xff]
    %v278 = vld [vmem:[#allocation8 + $0x38] sm:$0xff]
    %v279 = vld [vmem:[#allocation8 + $0x40] sm:$0xff]
    %v280 = vld [vmem:[#allocation8 + $0x48] sm:$0xff]
    %v281 = vld [vmem:[#allocation8 + $0x50] sm:$0xff]
    %v282 = vld [vmem:[#allocation8 + $0x58] sm:$0xff]
    %v283 = vld [vmem:[#allocation8 + $0x60] sm:$0xff]
    %v284 = vld [vmem:[#allocation8 + $0x68] sm:$0xff]
    %v285 = vld [vmem:[#allocation8 + $0x70] sm:$0xff]
    %v286 = vld [vmem:[#allocation8 + $0x78] sm:$0xff]
    %287 = vmatprep.subr.mxu0 0.0
    %288 = vmatpush1.msra.mxu0 %v271
    %289 = vmatprep.subr.mxu0 0.0
    %290 = vmatpush1.msra.mxu0 %v272
    %291 = vmatprep.subr.mxu0 0.0
    %292 = vmatpush1.msra.mxu0 %v273
    %293 = vmatprep.subr.mxu0 0.0
    %294 = vmatpush1.msra.mxu0 %v274
    %295 = vmatprep.subr.mxu0 0.0
    %296 = vmatpush1.msra.mxu0 %v275
    %297 = vmatprep.subr.mxu0 0.0
    %298 = vmatpush1.msra.mxu0 %v276
    %299 = vmatprep.subr.mxu0 0.0
    %300 = vmatpush1.msra.mxu0 %v277
    %301 = vmatprep.subr.mxu0 0.0
    %302 = vmatpush1.msra.mxu0 %v278
    %303 = vmatprep.subr.mxu0 0.0
    %304 = vmatpush1.msra.mxu0 %v279
    %305 = vmatprep.subr.mxu0 0.0
    %306 = vmatpush1.msra.mxu0 %v280
    %307 = vmatprep.subr.mxu0 0.0
    %308 = vmatpush1.msra.mxu0 %v281
    %309 = vmatprep.subr.mxu0 0.0
    %310 = vmatpush1.msra.mxu0 %v282
    %311 = vmatprep.subr.mxu0 0.0
    %312 = vmatpush1.msra.mxu0 %v283
    %313 = vmatprep.subr.mxu0 0.0
    %314 = vmatpush1.msra.mxu0 %v284
    %315 = vmatprep.subr.mxu0 0.0
    %316 = vmatpush1.msra.mxu0 %v285
    %317 = vmatprep.subr.mxu0 0.0
    %318 = vmatpush1.msra.mxu0 %v286
    %319 = vmatprep.subr.mxu0 0.0
    %320 = vmatpush1.msra.mxu0 0.0
    %321 = vmatprep.subr.mxu0 0.0
    %322 = vmatpush1.msra.mxu0 0.0
    %323 = vmatprep.subr.mxu0 0.0
    %324 = vmatpush1.msra.mxu0 0.0
    %325 = vmatprep.subr.mxu0 0.0
    %326 = vmatpush1.msra.mxu0 0.0
    %327 = vmatprep.subr.mxu0 0.0
    %328 = vmatpush1.msra.mxu0 0.0
    %329 = vmatprep.subr.mxu0 0.0
    %330 = vmatpush1.msra.mxu0 0.0
    %331 = vmatprep.subr.mxu0 0.0
    %332 = vmatpush1.msra.mxu0 0.0
    %333 = vmatprep.subr.mxu0 0.0
    %334 = vmatpush1.msra.mxu0 0.0
    %335 = vmatprep.subr.mxu0 0.0
    %336 = vmatpush1.msra.mxu0 0.0
    %337 = vmatprep.subr.mxu0 0.0
    %338 = vmatpush1.msra.mxu0 0.0
    %339 = vmatprep.subr.mxu0 0.0
    %340 = vmatpush1.msra.mxu0 0.0
    %341 = vmatprep.subr.mxu0 0.0
    %342 = vmatpush1.msra.mxu0 0.0
    %343 = vmatprep.subr.mxu0 0.0
    %344 = vmatpush1.msra.mxu0 0.0
    %345 = vmatprep.subr.mxu0 0.0
    %346 = vmatpush1.msra.mxu0 0.0
    %347 = vmatprep.subr.mxu0 0.0
    %348 = vmatpush1.msra.mxu0 0.0
    %349 = vmatprep.subr.mxu0 0.0
    %350 = vmatpush1.msra.mxu0 0.0
    %351 = vmatprep.mubr.f32.mxu0 0.0
    %352 = vmatmul.mubr.f32.gmra.mrb[0].mxu0 %v270
    %v353 = vpop.f32.mrb[0].mxu0
    %v354 = vadd.f32 0.0, %v353
    %v355 = vpop.f32.mrb[0].mxu0
    %356 = vdwg.mxu0
    %v357 = vsub.f32 %v270, %v354
    %v358 = vmul.f32 %v357, %v357
    %359 = vmatprep.subr.mxu0 0.0
    %360 = vmatpush1.msra.mxu0 %v271
    %361 = vmatprep.subr.mxu0 0.0
    %362 = vmatpush1.msra.mxu0 %v272
    %363 = vmatprep.subr.mxu0 0.0
    %364 = vmatpush1.msra.mxu0 %v273
    %365 = vmatprep.subr.mxu0 0.0
    %366 = vmatpush1.msra.mxu0 %v274
    %367 = vmatprep.subr.mxu0 0.0
    %368 = vmatpush1.msra.mxu0 %v275
    %369 = vmatprep.subr.mxu0 0.0
    %370 = vmatpush1.msra.mxu0 %v276
    %371 = vmatprep.subr.mxu0 0.0
    %372 = vmatpush1.msra.mxu0 %v277
    %373 = vmatprep.subr.mxu0 0.0
    %374 = vmatpush1.msra.mxu0 %v278
    %375 = vmatprep.subr.mxu0 0.0
    %376 = vmatpush1.msra.mxu0 %v279
    %377 = vmatprep.subr.mxu0 0.0
    %378 = vmatpush1.msra.mxu0 %v280
    %379 = vmatprep.subr.mxu0 0.0
    %380 = vmatpush1.msra.mxu0 %v281
    %381 = vmatprep.subr.mxu0 0.0
    %382 = vmatpush1.msra.mxu0 %v282
    %383 = vmatprep.subr.mxu0 0.0
    %384 = vmatpush1.msra.mxu0 %v283
    %385 = vmatprep.subr.mxu0 0.0
    %386 = vmatpush1.msra.mxu0 %v284
    %387 = vmatprep.subr.mxu0 0.0
    %388 = vmatpush1.msra.mxu0 %v285
    %389 = vmatprep.subr.mxu0 0.0
    %390 = vmatpush1.msra.mxu0 %v286
    %391 = vmatprep.subr.mxu0 0.0
    %392 = vmatpush1.msra.mxu0 0.0
    %393 = vmatprep.subr.mxu0 0.0
    %394 = vmatpush1.msra.mxu0 0.0
    %395 = vmatprep.subr.mxu0 0.0
    %396 = vmatpush1.msra.mxu0 0.0
    %397 = vmatprep.subr.mxu0 0.0
    %398 = vmatpush1.msra.mxu0 0.0
    %399 = vmatprep.subr.mxu0 0.0
    %400 = vmatpush1.msra.mxu0 0.0
    %401 = vmatprep.subr.mxu0 0.0
    %402 = vmatpush1.msra.mxu0 0.0
    %403 = vmatprep.subr.mxu0 0.0
    %404 = vmatpush1.msra.mxu0 0.0
    %405 = vmatprep.subr.mxu0 0.0
    %406 = vmatpush1.msra.mxu0 0.0
    %407 = vmatprep.subr.mxu0 0.0
    %408 = vmatpush1.msra.mxu0 0.0
    %409 = vmatprep.subr.mxu0 0.0
    %410 = vmatpush1.msra.mxu0 0.0
    %411 = vmatprep.subr.mxu0 0.0
    %412 = vmatpush1.msra.mxu0 0.0
    %413 = vmatprep.subr.mxu0 0.0
    %414 = vmatpush1.msra.mxu0 0.0
    %415 = vmatprep.subr.mxu0 0.0
    %416 = vmatpush1.msra.mxu0 0.0
    %417 = vmatprep.subr.mxu0 0.0
    %418 = vmatpush1.msra.mxu0 0.0
    %419 = vmatprep.subr.mxu0 0.0
    %420 = vmatpush1.msra.mxu0 0.0
    %421 = vmatprep.subr.mxu0 0.0
    %422 = vmatpush1.msra.mxu0 0.0
    %423 = vmatprep.mubr.f32.mxu0 0.0
    %424 = vmatmul.mubr.f32.gmra.mrb[0].mxu0 %v358
    %v425 = vpop.f32.mrb[0].mxu0
    %v426 = vadd.f32 1e-05, %v425
    %v427 = vpop.f32.mrb[0].mxu0
    %428 = vdwg.mxu0
    %v429 = vrsqrt.pop %v426
    %v430 = vmul.f32 %v357, %v429
    %v431 = vld [vmem:[%s6] sm:$0x1]
    %v433 = vlaneseq
    %v434 = vshrl.u32 %v433, 7
    %v435 = vsub.s32 0, %v434
    %v436 = vrot.slane %v431, %v435
    %v438 = vmul.f32 %v430, %v436
    %v439 = vld [vmem:[%s7] sm:$0x1]
    %v441 = vlaneseq
    %v442 = vshrl.u32 %v441, 7
    %v443 = vsub.s32 0, %v442
    %v444 = vrot.slane %v439, %v443
    %v446 = vadd.f32 %v438, %v444
    %447 = vst [vmem:[#allocation10] sm:$0xf] %v446
    // Predicated region
    $region50: #{tpu_custom_call.1} parent=1 // pred_check
      _
    $region51: #{tpu_custom_call.1} parent=1 // pred_check_branch
      %449 = sbr.rel (0) target = $region53
    $region52: #{tpu_custom_call.1} parent=1 // pred_region
      %s451 = ssub.s32 64, 64
      %452 = vsyncadd [#allocation4], %s451
      %s454 = sshll.u32 [#allocation10], 4
      %s455 = int_to_ptr.vmem [resolvable:$true] %s454
      %457 = dma.vmem_to_hbm [thread:$0]  %s455, 64, %s8, [#allocation4]
    $region53: #{tpu_custom_call.1} parent=1 // pred_fallthru
      _
    // Predicated region
    $region54: #{tpu_custom_call.1} parent=1 // pred_check
      _
    $region55: #{tpu_custom_call.1} parent=1 // pred_check_branch
      %459 = sbr.rel (0) target = $region57
    $region56: #{tpu_custom_call.1} parent=1 // pred_region
      %460 = dma.done [#allocation4], 64
    $region57: #{tpu_custom_call.1} parent=1 // pred_fallthru
      _
    %461 = vsyncpa [#allocation3], 1
    %462 = vsyncpa [#allocation6], 1
    %463 = vsyncpa [#allocation9], 1
    %464 = vsyncpa [#allocation4], 1

</llo_original>
